<compile_context>
chip_gen: v6e
topology: v6e:2x2x1
jax: 0.10.0
libtpu: 0.0.40
codegen_flags: <defaults>
</compile_context>

<pallas_src>
import math

import jax
import jax.numpy as jnp
from jax.experimental import pallas as pl
from jax.experimental.pallas import tpu as pltpu


def _round_up(x, m):
    return ((x + m - 1) // m) * m


def _pick_tile(dim, cap, align):
    """Largest tile <= cap (multiple of `align`), preferring one that evenly
    divides round_up(dim, align) so no padding beyond `align` is needed."""
    padded = _round_up(dim, align)
    if padded <= cap:
        return padded
    cap = max(align, cap - cap % align)
    t = cap
    while t >= max(align, cap // 2):
        if padded % t == 0:
            return t
        t -= align
    return cap  # fall back: pad up to a multiple of cap


# ---------------------------------------------------------------------------
# Kernels
# ---------------------------------------------------------------------------
def _make_linear_kernel(has_bias, use_scratch, compute_dtype):
    def _dot(x_ref, w_ref):
        a, b = x_ref[...], w_ref[...]
        if compute_dtype is not None:
            a = a.astype(compute_dtype)
            b = b.astype(compute_dtype)
        return jnp.dot(a, b, preferred_element_type=jnp.float32)

    if use_scratch:
        # Non-f32 output: f32 VMEM accumulator, cast + bias at finalize.
        def kernel(*refs):
            if has_bias:
                x_ref, w_ref, b_ref, o_ref, acc_ref = refs
            else:
                x_ref, w_ref, o_ref, acc_ref = refs
            k = pl.program_id(2)

            @pl.when(k == 0)
            def _():
                acc_ref[...] = jnp.zeros_like(acc_ref)

            acc_ref[...] += _dot(x_ref, w_ref)

            @pl.when(k == pl.num_programs(2) - 1)
            def _():
                r = acc_ref[...]
                if has_bias:
                    r = r + b_ref[...].astype(jnp.float32)
                o_ref[...] = r.astype(o_ref.dtype)

    else:
        # f32 output: the output block is resident across the K axis (its
        # index_map ignores k), so accumulate directly into it.  Bias is
        # written once at k==0 as the accumulator init.
        def kernel(*refs):
            if has_bias:
                x_ref, w_ref, b_ref, o_ref = refs
            else:
                x_ref, w_ref, o_ref = refs
            k = pl.program_id(2)

            @pl.when(k == 0)
            def _():
                if has_bias:
                    o_ref[...] = jnp.broadcast_to(
                        b_ref[...].astype(jnp.float32), o_ref.shape
                    )
                else:
                    o_ref[...] = jnp.zeros_like(o_ref)

            o_ref[...] += _dot(x_ref, w_ref)

    return kernel


# ---------------------------------------------------------------------------
# Wrapper
# ---------------------------------------------------------------------------
def pallas_linear(x, w_t, bias=None, *, compute_dtype=None,
                  tm_max=512, tn_max=512, tk_max=None):
    """Linear forward: y = x @ w_t + bias.

    x:    [..., in_dim]
    w_t:  [in_dim, out_dim]   (pre-transposed ONCE at parameter creation;
                               equals PyTorch weight.T)
    bias: [out_dim] or None
    compute_dtype: optional dtype (e.g. jnp.bfloat16) to cast the MXU inputs
                   to; accumulation stays f32.  None = no cast (strict path).
    Returns [..., out_dim] in x.dtype.
    """
    *lead, in_dim = x.shape
    k_dim, out_dim = w_t.shape
    assert k_dim == in_dim, "weight/in_dim mismatch"

    m = 1
    for d in lead:
        m *= d
    x2d = x.reshape(m, in_dim)

    out_dtype = x.dtype
    x_item = x.dtype.itemsize
    w_item = w_t.dtype.itemsize
    o_item = jnp.dtype(out_dtype).itemsize

    # Sublane multiple for the second-minor dim (8/16/32 for 4/2/1-byte).
    sub = {4: 8, 2: 16, 1: 32}.get(x_item, 8)

    # -------- per-chip VMEM budget -----------------------------------------
    try:
        vmem_cap = pltpu.get_tpu_info().vmem_capacity_bytes
    except Exception:
        vmem_cap = 64 << 20  # conservative (v7x-sized) fallback
    if vmem_cap <= (64 << 20):            # v7x-class: 64 MiB per TensorCore
        vmem_budget, vmem_limit = 24 << 20, 28 << 20
    else:                                 # v5e / v6e: 128 MiB per TensorCore
        vmem_budget, vmem_limit = 48 << 20, 64 << 20

    # -------- tile selection ------------------------------------------------
    if tk_max is None:
        tk_max = 2048 if x_item <= 2 else 1024

    if _round_up(m, sub) <= 64:
        # Decode-style small M: weight-HBM bound -> enlarge the weight tile.
        tk_max = max(tk_max, 2048 if x_item <= 2 else 1024)
        tn_max = max(tn_max, 512)

    tm = _pick_tile(m, tm_max, sub)
    tn = _pick_tile(out_dim, tn_max, 128)
    tk = _pick_tile(in_dim, tk_max, 128)

    # Guarantee >= 2 blocks on a parallel axis so both v7x TensorCores are fed.
    np128 = _round_up(out_dim, 128)
    if (_round_up(m, tm) // tm == 1 and _round_up(out_dim, tn) // tn == 1
            and np128 >= 256):
        tn = max(128, ((np128 // 2) // 128) * 128)

    use_scratch = jnp.dtype(out_dtype) != jnp.dtype(jnp.float32)

    def _footprint(tm_, tn_, tk_):
        f = 2 * (tm_ * tk_ * x_item + tk_ * tn_ * w_item)   # dbl-buffered ins
        f += 2 * tm_ * tn_ * o_item                         # dbl-buffered out
        if use_scratch:
            f += tm_ * tn_ * 4
        if bias is not None:
            f += 2 * tn_ * bias.dtype.itemsize
        return f

    # Shrink (K first, then N, then M) until we fit the per-chip budget.
    while _footprint(tm, tn, tk) > vmem_budget:
        if tk > 128 and tk >= max(tn, 256):
            tk = max(128, (tk // 2 // 128) * 128)
        elif tn > 128:
            tn = max(128, (tn // 2 // 128) * 128)
        elif tm > sub:
            tm = max(sub, (tm // 2 // sub) * sub)
        else:
            break

    mp = _round_up(m, tm)
    np_ = _round_up(out_dim, tn)
    kp = _round_up(in_dim, tk)

    # Zero-pad only where alignment requires (zeros are neutral along K).
    if (mp, kp) != (m, in_dim):
        x2d = jnp.pad(x2d, ((0, mp - m), (0, kp - in_dim)))
    w_p = w_t
    if (kp, np_) != (in_dim, out_dim):
        w_p = jnp.pad(w_t, ((0, kp - in_dim), (0, np_ - out_dim)))

    grid = (mp // tm, np_ // tn, kp // tk)
    gm, gn, gk = grid

    # Cost estimate reflecting the actual re-streaming of each operand.
    bytes_accessed = (x_item * mp * kp * gn
                      + w_item * kp * np_ * gm
                      + o_item * mp * np_)
    if bias is not None:
        bytes_accessed += bias.dtype.itemsize * np_ * gm
    cost = pl.CostEstimate(
        flops=2 * mp * np_ * kp,
        bytes_accessed=int(bytes_accessed),
        transcendentals=0,
    )
    cparams = pltpu.CompilerParams(
        dimension_semantics=("parallel", "parallel", "arbitrary"),
        vmem_limit_bytes=vmem_limit,
    )

    x_spec = pl.BlockSpec((tm, tk), lambda i, j, k: (i, k))
    w_spec = pl.BlockSpec((tk, tn), lambda i, j, k: (k, j))
    o_spec = pl.BlockSpec((tm, tn), lambda i, j, k: (i, j))

    in_specs = [x_spec, w_spec]
    args = [x2d, w_p]
    has_bias = bias is not None
    if has_bias:
        b2d = bias.reshape(1, out_dim)
        if np_ != out_dim:
            b2d = jnp.pad(b2d, ((0, 0), (0, np_ - out_dim)))
        in_specs.append(pl.BlockSpec((1, tn), lambda i, j, k: (0, j)))
        args.append(b2d)

    scratch = [pltpu.VMEM((tm, tn), jnp.float32)] if use_scratch else []

    kernel = _make_linear_kernel(has_bias, use_scratch, compute_dtype)

    y2d = pl.pallas_call(
        kernel,
        out_shape=jax.ShapeDtypeStruct((mp, np_), out_dtype),
        grid_spec=pltpu.PrefetchScalarGridSpec(
            num_scalar_prefetch=0,
            grid=grid,
            in_specs=in_specs,
            out_specs=o_spec,
            scratch_shapes=scratch,
        ),
        compiler_params=cparams,
        cost_estimate=cost,
    )(*args)

    if (mp, np_) != (m, out_dim):
        y2d = y2d[:m, :out_dim]
    return y2d.reshape(*lead, out_dim)


# ---------------------------------------------------------------------------
# Parameter init (matches nn.Linear + xavier_uniform_, gain('linear') = 1.0).
# Weight is created DIRECTLY in [in_dim, out_dim] layout so no per-call
# transpose is needed (the xavier bound is layout-symmetric).
# ---------------------------------------------------------------------------
def init_linear_params(key, in_dim, out_dim, bias=True, gain=1.0,
                       dtype=jnp.float32):
    k_w, k_b = jax.random.split(key)
    bound = gain * math.sqrt(6.0 / (in_dim + out_dim))
    w_t = jax.random.uniform(
        k_w, (in_dim, out_dim), dtype=dtype, minval=-bound, maxval=bound
    )
    b = None
    if bias:
        b_bound = 1.0 / math.sqrt(in_dim)  # nn.Linear default bias init
        b = jax.random.uniform(
            k_b, (out_dim,), dtype=dtype, minval=-b_bound, maxval=b_bound
        )
    return w_t, b


if __name__ == "__main__":
    key = jax.random.PRNGKey(0)
    k_x, k_p, k_x2, k_p2 = jax.random.split(key, 4)

    # ---- Small shape matching the module's typical use (strict f32 path) --
    batch, seq, in_dim, out_dim = 2, 8, 32, 64
    x = jax.random.normal(k_x, (batch, seq, in_dim), dtype=jnp.float32)
    w_t, b = init_linear_params(k_p, in_dim, out_dim, bias=True)

    y = jax.block_until_ready(pallas_linear(x, w_t, b))
    y_ref = x @ w_t + b
    assert y.shape == (batch, seq, out_dim)
    assert jnp.allclose(y, y_ref, atol=1e-5, rtol=1e-5)

    y_nb = jax.block_until_ready(pallas_linear(x, w_t, None))
    assert jnp.allclose(y_nb, x @ w_t, atol=1e-5, rtol=1e-5)

    # ---- Larger shape: exercises the >=2 parallel-block split -------------
    b2, s2, d_in2, d_out2 = 4, 64, 384, 512
    x2 = jax.random.normal(k_x2, (b2, s2, d_in2), dtype=jnp.float32)
    w2, bias2 = init_linear_params(k_p2, d_in2, d_out2, bias=True)
    y2 = jax.block_until_ready(pallas_linear(x2, w2, bias2))
    y2_ref = x2 @ w2 + bias2
    assert jnp.allclose(y2, y2_ref, atol=1e-4, rtol=1e-4)

    # ---- bf16 inputs/outputs: exercises the scratch-accumulator path ------
    xb = x.astype(jnp.bfloat16)
    wb = w_t.astype(jnp.bfloat16)
    bb = b.astype(jnp.bfloat16)
    yb = jax.block_until_ready(pallas_linear(xb, wb, bb))
    yb_ref = (xb.astype(jnp.float32) @ wb.astype(jnp.float32)
              + bb.astype(jnp.float32))
    assert jnp.allclose(yb.astype(jnp.float32), yb_ref, atol=5e-2, rtol=5e-2)

    print("KERNEL_OK")
</pallas_src>

<mosaic_0001>
module attributes {stable_mosaic.version = 11 : i64} {
  func.func @kernel(%arg0: i32, %arg1: i32, %arg2: i32, %arg3: memref<16x128xf32, #tpu.memory_space<vmem>>, %arg4: memref<128x128xf32, #tpu.memory_space<vmem>>, %arg5: memref<1x128xf32, #tpu.memory_space<vmem>>, %arg6: memref<16x128xf32, #tpu.memory_space<vmem>>) attributes {dimension_semantics = [#tpu.dimension_semantics<parallel>, #tpu.dimension_semantics<parallel>, #tpu.dimension_semantics<arbitrary>], iteration_bounds = array<i64: 1, 1, 1>, scalar_prefetch = 0 : i64, scratch_operands = 0 : i64, tpu.core_type = #tpu.core_type<tc>, window_params = [{transform_indices = @transform_0, window_bounds = array<i64: 16, 128>}, {transform_indices = @transform_1, window_bounds = array<i64: 128, 128>}, {transform_indices = @transform_2, window_bounds = array<i64: 1, 128>}, {transform_indices = @transform_3, window_bounds = array<i64: 16, 128>}]} {
    %c0_i32 = arith.constant 0 : i32
    %0 = arith.cmpi eq, %arg2, %c0_i32 : i32
    %1 = arith.extui %0 : i1 to i32
    %c0_i32_0 = arith.constant 0 : i32
    %2 = arith.cmpi ne, %1, %c0_i32_0 : i32
    scf.if %2 {
      %c0_8 = arith.constant 0 : index
      %c0_9 = arith.constant 0 : index
      %9 = vector.load %arg5[%c0_8, %c0_9] : memref<1x128xf32, #tpu.memory_space<vmem>>, vector<1x128xf32>
      %10 = vector.shape_cast %9 : vector<1x128xf32> to vector<1x128xf32>
      %11 = vector.broadcast %10 : vector<1x128xf32> to vector<16x128xf32>
      %c0_10 = arith.constant 0 : index
      %c0_11 = arith.constant 0 : index
      %12 = vector.load %arg6[%c0_10, %c0_11] : memref<16x128xf32, #tpu.memory_space<vmem>>, vector<16x128xf32>
      tpu.vector_store %arg6[%c0_10, %c0_11], %11 {strides = array<i32>} : memref<16x128xf32, #tpu.memory_space<vmem>>, vector<16x128xf32>,
    } else {
    }
    %c0 = arith.constant 0 : index
    %c0_1 = arith.constant 0 : index
    %3 = vector.load %arg6[%c0, %c0_1] : memref<16x128xf32, #tpu.memory_space<vmem>>, vector<16x128xf32>
    %c0_2 = arith.constant 0 : index
    %c0_3 = arith.constant 0 : index
    %4 = vector.load %arg3[%c0_2, %c0_3] : memref<16x128xf32, #tpu.memory_space<vmem>>, vector<16x128xf32>
    %c0_4 = arith.constant 0 : index
    %c0_5 = arith.constant 0 : index
    %5 = vector.load %arg4[%c0_4, %c0_5] : memref<128x128xf32, #tpu.memory_space<vmem>>, vector<128x128xf32>
    %cst = arith.constant dense<0.000000e+00> : vector<16x128xf32>
    %6 = tpu.matmul %4, %5, %cst {dimension_numbers = #tpu.dot_dimension_numbers<[1], [0], [0], [1], [0, 0, 1, 1], [], []>} : vector<16x128xf32>, vector<128x128xf32>, vector<16x128xf32> -> vector<16x128xf32>
    %7 = arith.addf %3, %6 : vector<16x128xf32>
    %c0_6 = arith.constant 0 : index
    %c0_7 = arith.constant 0 : index
    %8 = vector.load %arg6[%c0_6, %c0_7] : memref<16x128xf32, #tpu.memory_space<vmem>>, vector<16x128xf32>
    tpu.vector_store %arg6[%c0_6, %c0_7], %7 {strides = array<i32>} : memref<16x128xf32, #tpu.memory_space<vmem>>, vector<16x128xf32>,
    return
  }
  func.func @transform_0(%arg0: i32, %arg1: i32, %arg2: i32) -> (i32, i32) {
    %c0_i32 = arith.constant 0 : i32
    return %arg0, %arg2 : i32, i32
  }
  func.func @transform_1(%arg0: i32, %arg1: i32, %arg2: i32) -> (i32, i32) {
    %c0_i32 = arith.constant 0 : i32
    return %arg2, %arg1 : i32, i32
  }
  func.func @transform_2(%arg0: i32, %arg1: i32, %arg2: i32) -> (i32, i32) {
    %c0_i32 = arith.constant 0 : i32
    %c0_i32_0 = arith.constant 0 : i32
    return %c0_i32, %arg1 : i32, i32
  }
  func.func @transform_3(%arg0: i32, %arg1: i32, %arg2: i32) -> (i32, i32) {
    %c0_i32 = arith.constant 0 : i32
    return %arg0, %arg1 : i32, i32
  }
}

</mosaic_0001>

<llo_original>
// kernel: tpu_custom_call.1
$region0: #{tpu_custom_call.1}
  #allocation0 [shape = 'u32[]', space=smem, size = 0x4, offset = 0x4, fixed_abs, tag = 'smem constant byte address 0x4 - core index']
  #allocation1 [shape = 'u32[144,128]{1,0:T(1,128)}', space=vmem, size = 0x12000, scoped, tag = 'internal scratch']
  %s0 = inlined_call_operand.hbm [shape: f32[16,128], index: 0, kind: input, shape index: {}]
  %s1 = inlined_call_operand.hbm [shape: f32[128,128], index: 1, kind: input, shape index: {}]
  %s2 = inlined_call_operand.vmem [shape: f32[1,128], index: 2, kind: input, shape index: {}]
  %s3 = inlined_call_operand.hbm [shape: f32[16,128], index: 3, kind: output, shape index: {}]
  %s4 = sld [smem:[#allocation0]]
  $region34: #{tpu_custom_call.1} parent=0
    _
  %s6 = ssub.s32 1, %s4
  %s7 = scalar_select 0, %s6, %s4
  $region1: #{tpu_custom_call.1} parent=0
    #allocation2 [shape = 'u8[8192]{0}', space=vmem, size = 0x2000, scoped, tag = 'input window, operand 0, single buffered']
    #allocation3 [shape = 's32[1]{0}', space=sflag, size = 0x4, scoped, tag = 'scoped memory for tpu_custom_call.1']
    #allocation4 [shape = 's32[1]{0}', space=sflag, size = 0x4, scoped, tag = 'scoped memory for tpu_custom_call.1']
    #allocation5 [shape = 'u8[65536]{0}', space=vmem, size = 0x10000, scoped, tag = 'input window, operand 1, single buffered']
    #allocation6 [shape = 's32[1]{0}', space=sflag, size = 0x4, scoped, tag = 'scoped memory for tpu_custom_call.1']
    #allocation7 [shape = 'u8[8192]{0}', space=vmem, size = 0x2000, scoped, tag = 'output window, operand 0, single buffered']
    %8 = vsyncpa [#allocation3], 0
    %9 = vsyncpa [#allocation6], 0
    %10 = vsyncpa [#allocation4], 0
    // Predicated region
    $region2: #{tpu_custom_call.1} parent=1 // pred_check
      _
    $region3: #{tpu_custom_call.1} parent=1 // pred_check_branch
      %12 = sbr.rel (0) target = $region5
    $region4: #{tpu_custom_call.1} parent=1 // pred_region
      %s14 = ssub.s32 256, 256
      %15 = vsyncadd [#allocation3], %s14
      %s16 = sshll.u32 [#allocation2], 4
      %s17 = int_to_ptr.vmem [resolvable:$true] %s16
      %22 = dma.hbm_to_vmem [thread:$0]  %s0, 256, %s17, [#allocation3], 128, 128, 8
    $region5: #{tpu_custom_call.1} parent=1 // pred_fallthru
      _
    // Predicated region
    $region6: #{tpu_custom_call.1} parent=1 // pred_check
      _
    $region7: #{tpu_custom_call.1} parent=1 // pred_check_branch
      %24 = sbr.rel (0) target = $region9
    $region8: #{tpu_custom_call.1} parent=1 // pred_region
      %s26 = ssub.s32 2048, 2048
      %27 = vsyncadd [#allocation6], %s26
      %s28 = sshll.u32 [#allocation5], 4
      %s29 = int_to_ptr.vmem [resolvable:$true] %s28
      %34 = dma.hbm_to_vmem [thread:$0]  %s1, 2048, %s29, [#allocation6], 128, 128, 8
    $region9: #{tpu_custom_call.1} parent=1 // pred_fallthru
      _
    // Predicated region
    $region10: #{tpu_custom_call.1} parent=1 // pred_check
      _
    $region11: #{tpu_custom_call.1} parent=1 // pred_check_branch
      %36 = sbr.rel (0) target = $region13
    $region12: #{tpu_custom_call.1} parent=1 // pred_region
      _
    $region13: #{tpu_custom_call.1} parent=1 // pred_fallthru
      _
    // Predicated region
    $region14: #{tpu_custom_call.1} parent=1 // pred_check
      _
    $region15: #{tpu_custom_call.1} parent=1 // pred_check_branch
      %38 = sbr.rel (0) target = $region17
    $region16: #{tpu_custom_call.1} parent=1 // pred_region
      %39 = dma.done [#allocation3], 256
    $region17: #{tpu_custom_call.1} parent=1 // pred_fallthru
      _
    // Predicated region
    $region18: #{tpu_custom_call.1} parent=1 // pred_check
      _
    $region19: #{tpu_custom_call.1} parent=1 // pred_check_branch
      %41 = sbr.rel (0) target = $region21
    $region20: #{tpu_custom_call.1} parent=1 // pred_region
      %42 = dma.done [#allocation6], 2048
    $region21: #{tpu_custom_call.1} parent=1 // pred_fallthru
      _
    %p43 = scmp.eq.s32.totalorder 0, 0
    // Predicated region
    $region22: #{tpu_custom_call.1} parent=1 // pred_check
      %p44 = pneg %p43
    $region23: #{tpu_custom_call.1} parent=1 // pred_check_branch
      %46 = sbr.rel (%p44) target = $region25
    $region24: #{tpu_custom_call.1} parent=1 // pred_region
      %v47 = vld [vmem:[%s2] sm:$0x1]
      %v49 = vlaneseq
      %v50 = vshrl.u32 %v49, 7
      %v51 = vsub.s32 0, %v50
      %v52 = vrot.slane %v47, %v51
      %54 = vst [vmem:[#allocation7] sm:$0xff] %v52
      %55 = vst [vmem:[#allocation7 + $0x8] sm:$0xff] %v52
    $region25: #{tpu_custom_call.1} parent=1 // pred_fallthru
      _
    %v56 = vld [vmem:[#allocation7] sm:$0xff]
    %v57 = vld [vmem:[#allocation7 + $0x8] sm:$0xff]
    %v58 = vld [vmem:[#allocation2] sm:$0xff]
    %v59 = vld [vmem:[#allocation2 + $0x8] sm:$0xff]
    %v60 = vld [vmem:[#allocation5] sm:$0xff]
    %v61 = vld [vmem:[#allocation5 + $0x8] sm:$0xff]
    %v62 = vld [vmem:[#allocation5 + $0x10] sm:$0xff]
    %v63 = vld [vmem:[#allocation5 + $0x18] sm:$0xff]
    %v64 = vld [vmem:[#allocation5 + $0x20] sm:$0xff]
    %v65 = vld [vmem:[#allocation5 + $0x28] sm:$0xff]
    %v66 = vld [vmem:[#allocation5 + $0x30] sm:$0xff]
    %v67 = vld [vmem:[#allocation5 + $0x38] sm:$0xff]
    %v68 = vld [vmem:[#allocation5 + $0x40] sm:$0xff]
    %v69 = vld [vmem:[#allocation5 + $0x48] sm:$0xff]
    %v70 = vld [vmem:[#allocation5 + $0x50] sm:$0xff]
    %v71 = vld [vmem:[#allocation5 + $0x58] sm:$0xff]
    %v72 = vld [vmem:[#allocation5 + $0x60] sm:$0xff]
    %v73 = vld [vmem:[#allocation5 + $0x68] sm:$0xff]
    %v74 = vld [vmem:[#allocation5 + $0x70] sm:$0xff]
    %v75 = vld [vmem:[#allocation5 + $0x78] sm:$0xff]
    %76 = vmatprep.subr.mxu0 0.0
    %77 = vmatpush1.msra.mxu0 %v75
    %78 = vmatprep.subr.mxu0 0.0
    %79 = vmatpush1.msra.mxu0 %v74
    %80 = vmatprep.subr.mxu0 0.0
    %81 = vmatpush1.msra.mxu0 %v73
    %82 = vmatprep.subr.mxu0 0.0
    %83 = vmatpush1.msra.mxu0 %v72
    %84 = vmatprep.subr.mxu0 0.0
    %85 = vmatpush1.msra.mxu0 %v71
    %86 = vmatprep.subr.mxu0 0.0
    %87 = vmatpush1.msra.mxu0 %v70
    %88 = vmatprep.subr.mxu0 0.0
    %89 = vmatpush1.msra.mxu0 %v69
    %90 = vmatprep.subr.mxu0 0.0
    %91 = vmatpush1.msra.mxu0 %v68
    %92 = vmatprep.subr.mxu0 0.0
    %93 = vmatpush1.msra.mxu0 %v67
    %94 = vmatprep.subr.mxu0 0.0
    %95 = vmatpush1.msra.mxu0 %v66
    %96 = vmatprep.subr.mxu0 0.0
    %97 = vmatpush1.msra.mxu0 %v65
    %98 = vmatprep.subr.mxu0 0.0
    %99 = vmatpush1.msra.mxu0 %v64
    %100 = vmatprep.subr.mxu0 0.0
    %101 = vmatpush1.msra.mxu0 %v63
    %102 = vmatprep.subr.mxu0 0.0
    %103 = vmatpush1.msra.mxu0 %v62
    %104 = vmatprep.subr.mxu0 0.0
    %105 = vmatpush1.msra.mxu0 %v61
    %106 = vmatprep.subr.mxu0 0.0
    %107 = vmatpush1.msra.mxu0 %v60
    %108 = vmatprep.subr.mxu0 0.0
    %109 = vmatpush2.msra.mxu0 0.0
    %110 = vmatprep.subr.mxu0 0.0
    %111 = vmatpush2.msra.mxu0 0.0
    %112 = vmatprep.subr.mxu0 0.0
    %113 = vmatpush2.msra.mxu0 0.0
    %114 = vmatprep.subr.mxu0 0.0
    %115 = vmatpush2.msra.mxu0 0.0
    %116 = vmatprep.subr.mxu0 0.0
    %117 = vmatpush2.msra.mxu0 0.0
    %118 = vmatprep.subr.mxu0 0.0
    %119 = vmatpush2.msra.mxu0 0.0
    %120 = vmatprep.subr.mxu0 0.0
    %121 = vmatpush2.msra.mxu0 0.0
    %122 = vmatprep.subr.mxu0 0.0
    %123 = vmatpush2.msra.mxu0 0.0
    %124 = vmatprep.subr.mxu0 0.0
    %125 = vmatpush2.msra.mxu0 0.0
    %126 = vmatprep.subr.mxu0 0.0
    %127 = vmatpush2.msra.mxu0 0.0
    %128 = vmatprep.subr.mxu0 0.0
    %129 = vmatpush2.msra.mxu0 0.0
    %130 = vmatprep.subr.mxu0 0.0
    %131 = vmatpush2.msra.mxu0 0.0
    %132 = vmatprep.subr.mxu0 0.0
    %133 = vmatpush2.msra.mxu0 0.0
    %134 = vmatprep.subr.mxu0 0.0
    %135 = vmatpush2.msra.mxu0 0.0
    %136 = vmatprep.subr.mxu0 0.0
    %137 = vmatpush2.msra.mxu0 0.0
    %138 = vmatprep.subr.mxu0 0.0
    %139 = vmatpush2.msra.mxu0 0.0
    %140 = vmatprep.mubr.f32.mxu0 0.0
    %141 = vmatmul.mubr.f32.gmra.mxu0 %v58
    %v142 = vpop.f32.mrf.mxu0
    %v143 = vadd.f32 0.0, %v142
    %v144 = vpop.f32.mrf.mxu0
    %145 = vmatprep.mubr.f32.mxu0 0.0
    %146 = vmatmul.mubr.f32.gmra.mxu0 %v59
    %v147 = vpop.f32.mrf.mxu0
    %v148 = vadd.f32 0.0, %v147
    %v149 = vpop.f32.mrf.mxu0
    %150 = vdwg.mxu0
    %v151 = vadd.f32 %v56, %v143
    %v152 = vadd.f32 %v57, %v148
    %153 = vst [vmem:[#allocation7] sm:$0xff] %v151
    %154 = vst [vmem:[#allocation7 + $0x8] sm:$0xff] %v152
    // Predicated region
    $region26: #{tpu_custom_call.1} parent=1 // pred_check
      _
    $region27: #{tpu_custom_call.1} parent=1 // pred_check_branch
      %156 = sbr.rel (0) target = $region29
    $region28: #{tpu_custom_call.1} parent=1 // pred_region
      %s158 = ssub.s32 256, 256
      %159 = vsyncadd [#allocation4], %s158
      %s160 = sshll.u32 [#allocation7], 4
      %s161 = int_to_ptr.vmem [resolvable:$true] %s160
      %166 = dma.vmem_to_hbm [thread:$0]  %s161, 256, %s3, [#allocation4], 128, 128, 8
    $region29: #{tpu_custom_call.1} parent=1 // pred_fallthru
      _
    // Predicated region
    $region30: #{tpu_custom_call.1} parent=1 // pred_check
      _
    $region31: #{tpu_custom_call.1} parent=1 // pred_check_branch
      %168 = sbr.rel (0) target = $region33
    $region32: #{tpu_custom_call.1} parent=1 // pred_region
      %169 = dma.done [#allocation4], 256
    $region33: #{tpu_custom_call.1} parent=1 // pred_fallthru
      _
    %170 = vsyncpa [#allocation3], 1
    %171 = vsyncpa [#allocation6], 1
    %172 = vsyncpa [#allocation4], 1

</llo_original>
